<compile_context>
chip_gen: v7x
topology: tpu7x:2x2x1
jax: 0.10.0
libtpu: 0.0.40
codegen_flags: <defaults>
</compile_context>

<pallas_src>
import jax
import jax.numpy as jnp
import numpy as np
from jax.experimental import pallas as pl
from jax.experimental.pallas import tpu as pltpu

# ---------------- config (small, consistent with the module) ----------------
BATCH      = 2
SEQ        = 8
EMBED_DIM  = 32
N_HEADS    = 4
N_KV_HEADS = 2
HEAD_DIM   = EMBED_DIM // N_HEADS          # 8
GROUP      = N_HEADS // N_KV_HEADS         # 2
FFN_DIM    = 64
EPS        = 1e-5
BT         = BATCH * SEQ                   # flattened (batch, seq) rows = 16
HD         = N_HEADS * HEAD_DIM            # 32 (all heads' features, lane-dense)
HBT        = N_HEADS * BT                  # 64 (all heads' score columns, lane-dense)


def _rmsnorm(x, w):
    # x: [N, D], w: [1, D]
    ms = jnp.mean(x * x, axis=-1, keepdims=True)
    return x * jax.lax.rsqrt(ms + EPS) * w


# ---------------- Pallas kernel (single grid step, everything resident in VMEM) ----------------
def llama_block_kernel(x_ref, wrms_ref, wqkv_ref, wo_ref, wgu_ref, w2_ref,
                       cos_ref, sin_ref, bias_ref, bd_ref, msum_ref, o_ref):
    x = x_ref[...]                                     # [BT, D]
    wrms = wrms_ref[...]                               # [1, D]

    # ---- attention sub-layer ----
    h = _rmsnorm(x, wrms)                              # [BT, D]

    # One fused, lane-dense QKV projection. Column groups: [q | k | v | rot(q) | rot(k)],
    # each H*Dh = 32 lanes wide (GQA repeat, score scale and rotate-half baked in host-side).
    proj = jnp.dot(h, wqkv_ref[...], preferred_element_type=jnp.float32)   # [BT, 5*HD] = [16,160]
    q  = proj[:, 0 * HD:1 * HD]                        # [BT, HD]
    k  = proj[:, 1 * HD:2 * HD]
    v  = proj[:, 2 * HD:3 * HD]
    qr = proj[:, 3 * HD:4 * HD]                        # rotate-half(q), permutation in weights
    kr = proj[:, 4 * HD:5 * HD]                        # rotate-half(k)

    cos = cos_ref[...]                                 # [BT, HD] (host-tiled over heads)
    sin = sin_ref[...]
    qe = q * cos + qr * sin                            # RoPE: lane-dense VPU, no slice/concat/roll
    ke = k * cos + kr * sin

    # Block-diagonal K / V: [HBT, HD]. Selector bd zeroes cross-head blocks, so each of the
    # four [BT, BT] score blocks below is an exact per-head q_h @ k_h^T.
    bd = bd_ref[...]                                   # [HBT, HD] 0/1 selector (host-precomputed)
    kb = jnp.concatenate([ke] * N_HEADS, axis=0) * bd  # [64, 32]
    vb = jnp.concatenate([v] * N_HEADS, axis=0) * bd   # [64, 32]

    # All heads' scores side by side: [BT, HBT] = [16, 64] (one MXU push, 64 output lanes).
    s = jax.lax.dot_general(qe, kb, (((1,), (1,)), ((), ())),
                            preferred_element_type=jnp.float32)
    s = s + bias_ref[...]                              # additive causal + same-batch bias
    s = s - jnp.max(s, axis=-1, keepdims=True)         # per-row shift (softmax-invariant per block)
    p = jnp.exp(s)

    # Per-head row sums via one matmul against a 0/1 block-sum matrix (no cross-block reduce).
    denom = jnp.dot(p, msum_ref[...], preferred_element_type=jnp.float32)  # [16, 64]
    r = pl.reciprocal(denom, approx=True)              # EUP slot
    r = r * (2.0 - denom * r)                          # one Newton-Raphson step -> near-exact
    p = p * r

    ctx  = jnp.dot(p, vb, preferred_element_type=jnp.float32)              # [BT, HD] = [16, 32]
    attn = jnp.dot(ctx, wo_ref[...], preferred_element_type=jnp.float32)   # [BT, D], K = H*Dh = 32
    x = x + attn

    # ---- feed-forward sub-layer (SwiGLU); module reuses the same RMSNorm weight ----
    h2 = _rmsnorm(x, wrms)
    gu = jnp.dot(h2, wgu_ref[...], preferred_element_type=jnp.float32)     # [BT, 2*FFN] = 128 lanes
    g = gu[:, :FFN_DIM]
    u = gu[:, FFN_DIM:]
    f = (g * jax.nn.sigmoid(g)) * u
    o_ref[...] = x + jnp.dot(f, w2_ref[...], preferred_element_type=jnp.float32)


# ---------------- wrapper ----------------
def llama_transformer(x, packed):
    B, T, D = x.shape
    x_flat = x.reshape(B * T, D)
    args = (x_flat,) + tuple(packed)

    def full_spec(a):
        return pl.BlockSpec(a.shape, lambda i, _n=a.ndim: (0,) * _n)

    out = pl.pallas_call(
        llama_block_kernel,
        out_shape=jax.ShapeDtypeStruct((B * T, D), x.dtype),
        grid_spec=pltpu.PrefetchScalarGridSpec(
            num_scalar_prefetch=0,
            grid=(1,),                                  # single step; at production BT tile rows
            in_specs=[full_spec(a) for a in args],      # and mark the row axis "parallel" (v7x 2 TCs)
            out_specs=pl.BlockSpec((B * T, D), lambda i: (0, 0)),
        ),
        compiler_params=pltpu.CompilerParams(
            dimension_semantics=("arbitrary",)),
    )(*args)
    return out.reshape(B, T, D)


# ---------------- raw (module-style) parameters + host-side packing ----------------
def make_raw_params(key):
    ks = jax.random.split(key, 8)
    scale = 0.02
    wrms = jnp.ones((1, EMBED_DIM), jnp.float32)
    wq = scale * jax.random.normal(ks[0], (EMBED_DIM, N_HEADS * HEAD_DIM), jnp.float32)
    wk = scale * jax.random.normal(ks[1], (EMBED_DIM, N_KV_HEADS * HEAD_DIM), jnp.float32)
    wv = scale * jax.random.normal(ks[2], (EMBED_DIM, N_KV_HEADS * HEAD_DIM), jnp.float32)
    wo = scale * jax.random.normal(ks[3], (N_HEADS * HEAD_DIM, EMBED_DIM), jnp.float32)
    w1 = scale * jax.random.normal(ks[4], (EMBED_DIM, FFN_DIM), jnp.float32)
    w2 = scale * jax.random.normal(ks[5], (FFN_DIM, EMBED_DIM), jnp.float32)
    w3 = scale * jax.random.normal(ks[6], (EMBED_DIM, FFN_DIM), jnp.float32)

    # RoPE tables, rotate-half convention: [T, HEAD_DIM]
    inv_freq = 1.0 / (10000.0 ** (jnp.arange(0, HEAD_DIM, 2, dtype=jnp.float32) / HEAD_DIM))
    pos = jnp.arange(SEQ, dtype=jnp.float32)
    ang = pos[:, None] * inv_freq[None, :]
    cos_t = jnp.concatenate([jnp.cos(ang), jnp.cos(ang)], axis=-1)
    sin_t = jnp.concatenate([jnp.sin(ang), jnp.sin(ang)], axis=-1)
    return (wrms, wq, wk, wv, wo, w1, w2, w3, cos_t, sin_t)


def pack_params(raw):
    """Host-side re-layout: fold score scale, GQA kv repeat, rotate-half, the causal/same-batch
    mask and the block-diagonal selectors into constants so the kernel is pure wide matmuls."""
    (wrms, wq, wk, wv, wo, w1, w2, w3, cos_t, sin_t) = raw
    half = HEAD_DIM // 2

    def per_head(w):                                   # [D, Hw*Dh] -> [Hw, D, Dh]
        hw = w.shape[1] // HEAD_DIM
        return jnp.stack([w[:, i * HEAD_DIM:(i + 1) * HEAD_DIM] for i in range(hw)], axis=0)

    def rot_cols(wh):                                  # rot(x @ W) == x @ rot_cols(W), per head
        return jnp.concatenate([-wh[..., half:], wh[..., :half]], axis=-1)

    def flat(wh):                                      # [H, D, Dh] -> [D, H*Dh] (head-major lanes)
        return jnp.transpose(wh, (1, 0, 2)).reshape(EMBED_DIM, -1)

    kv_map = jnp.array([h // GROUP for h in range(N_HEADS)], jnp.int32)
    q_scale = 1.0 / (HEAD_DIM ** 0.5)

    wq_h = per_head(wq) * q_scale                      # [H, D, Dh]  (score scale folded in)
    wk_h = per_head(wk)[kv_map]                        # [H, D, Dh]  (GQA kv repeat folded in)
    wv_h = per_head(wv)[kv_map]
    w_qkv = jnp.concatenate(
        [flat(wq_h), flat(wk_h), flat(wv_h), flat(rot_cols(wq_h)), flat(rot_cols(wk_h))],
        axis=1)                                        # [D, 5*H*Dh] = [32, 160]

    w_gu = jnp.concatenate([w1, w3], axis=1)           # [D, 2*FFN] = [32, 128]  (fused gate|up)

    # RoPE tables tiled over heads (lane-dense) and over batch: [BT, H*Dh]
    cos = jnp.tile(jnp.tile(cos_t, (1, N_HEADS)), (BATCH, 1))
    sin = jnp.tile(jnp.tile(sin_t, (1, N_HEADS)), (BATCH, 1))

    # Additive causal + same-batch bias, tiled across the H head-blocks: [BT, H*BT]
    row = np.arange(BT)[:, None]
    col = np.arange(BT)[None, :]
    allowed = (row // SEQ == col // SEQ) & (row >= col)
    bias = jnp.asarray(np.tile(np.where(allowed, 0.0, -1e30), (1, N_HEADS)), jnp.float32)

    # Block-diagonal 0/1 selector for K/V expansion: [H*BT, H*Dh]
    rb = np.arange(HBT) // BT                          # row's head block
    ch = np.arange(HD) // HEAD_DIM                     # column's head
    bd = jnp.asarray((rb[:, None] == ch[None, :]).astype(np.float32))        # [64, 32]

    # Block-sum matrix for per-head softmax denominators: [H*BT, H*BT]
    blk = np.arange(HBT) // BT
    msum = jnp.asarray((blk[:, None] == blk[None, :]).astype(np.float32))    # [64, 64]

    return (wrms, w_qkv, wo, w_gu, w2, cos, sin, bias, bd, msum)


# ---------------- pure-JAX reference (standard per-head formulation, unpacked weights) ----------------
def reference(x, raw):
    (wrms, wq, wk, wv, wo, w1, w2, w3, cos_t, sin_t) = raw
    half = HEAD_DIM // 2

    def rope(t):                                       # [T, Dh]
        rot = jnp.concatenate([-t[:, half:], t[:, :half]], axis=-1)
        return t * cos_t + rot * sin_t

    def block(xe):                                     # [T, D]
        h = _rmsnorm(xe, wrms)
        q = h @ wq
        k = h @ wk
        v = h @ wv
        causal = jnp.arange(SEQ)[:, None] >= jnp.arange(SEQ)[None, :]
        outs = []
        for hd in range(N_HEADS):
            kvh = hd // GROUP
            qh = rope(q[:, hd * HEAD_DIM:(hd + 1) * HEAD_DIM])
            kh = rope(k[:, kvh * HEAD_DIM:(kvh + 1) * HEAD_DIM])
            vh = v[:, kvh * HEAD_DIM:(kvh + 1) * HEAD_DIM]
            s = (qh @ kh.T) / (HEAD_DIM ** 0.5)
            s = jnp.where(causal, s, -jnp.inf)
            outs.append(jax.nn.softmax(s, axis=-1) @ vh)
        xe = xe + jnp.concatenate(outs, axis=-1) @ wo
        h2 = _rmsnorm(xe, wrms)
        g = h2 @ w1
        u = h2 @ w3
        return xe + ((g * jax.nn.sigmoid(g)) * u) @ w2

    return jax.vmap(block)(x)


if __name__ == "__main__":
    key = jax.random.PRNGKey(0)
    kx, kp = jax.random.split(key)
    x = jax.random.normal(kx, (BATCH, SEQ, EMBED_DIM), jnp.float32)
    raw = make_raw_params(kp)
    packed = pack_params(raw)

    out = jax.block_until_ready(llama_transformer(x, packed))
    ref = jax.block_until_ready(reference(x, raw))

    # Tolerance: re-associated fused/packed matmuls (scale folded into wq, block-diagonal K/V,
    # matmul-based block sums) round slightly differently from the plain per-head reference;
    # the NR-refined reciprocal keeps the softmax division near-exact.
    np.testing.assert_allclose(np.asarray(out), np.asarray(ref), rtol=2e-4, atol=2e-4)
    print("KERNEL_OK")
</pallas_src>

<mosaic_0001>
module attributes {stable_mosaic.version = 11 : i64} {
  func.func @llama_block_kernel(%arg0: i32, %arg1: memref<16x32xf32, #tpu.memory_space<vmem>>, %arg2: memref<1x32xf32, #tpu.memory_space<vmem>>, %arg3: memref<32x160xf32, #tpu.memory_space<vmem>>, %arg4: memref<32x32xf32, #tpu.memory_space<vmem>>, %arg5: memref<32x128xf32, #tpu.memory_space<vmem>>, %arg6: memref<64x32xf32, #tpu.memory_space<vmem>>, %arg7: memref<16x32xf32, #tpu.memory_space<vmem>>, %arg8: memref<16x32xf32, #tpu.memory_space<vmem>>, %arg9: memref<16x64xf32, #tpu.memory_space<vmem>>, %arg10: memref<64x32xf32, #tpu.memory_space<vmem>>, %arg11: memref<64x64xf32, #tpu.memory_space<vmem>>, %arg12: memref<16x32xf32, #tpu.memory_space<vmem>>) attributes {dimension_semantics = [#tpu.dimension_semantics<arbitrary>], iteration_bounds = array<i64: 1>, scalar_prefetch = 0 : i64, scratch_operands = 0 : i64, tpu.core_type = #tpu.core_type<tc>, window_params = [{pipeline_mode = #tpu.pipeline_mode<synchronous>, transform_indices = @transform_0, window_bounds = array<i64: 16, 32>}, {pipeline_mode = #tpu.pipeline_mode<synchronous>, transform_indices = @transform_1, window_bounds = array<i64: 1, 32>}, {pipeline_mode = #tpu.pipeline_mode<synchronous>, transform_indices = @transform_2, window_bounds = array<i64: 32, 160>}, {pipeline_mode = #tpu.pipeline_mode<synchronous>, transform_indices = @transform_3, window_bounds = array<i64: 32, 32>}, {pipeline_mode = #tpu.pipeline_mode<synchronous>, transform_indices = @transform_4, window_bounds = array<i64: 32, 128>}, {pipeline_mode = #tpu.pipeline_mode<synchronous>, transform_indices = @transform_5, window_bounds = array<i64: 64, 32>}, {pipeline_mode = #tpu.pipeline_mode<synchronous>, transform_indices = @transform_6, window_bounds = array<i64: 16, 32>}, {pipeline_mode = #tpu.pipeline_mode<synchronous>, transform_indices = @transform_7, window_bounds = array<i64: 16, 32>}, {pipeline_mode = #tpu.pipeline_mode<synchronous>, transform_indices = @transform_8, window_bounds = array<i64: 16, 64>}, {pipeline_mode = #tpu.pipeline_mode<synchronous>, transform_indices = @transform_9, window_bounds = array<i64: 64, 32>}, {pipeline_mode = #tpu.pipeline_mode<synchronous>, transform_indices = @transform_10, window_bounds = array<i64: 64, 64>}, {pipeline_mode = #tpu.pipeline_mode<synchronous>, transform_indices = @transform_11, window_bounds = array<i64: 16, 32>}]} {
    %c0 = arith.constant 0 : index
    %c0_0 = arith.constant 0 : index
    %0 = vector.load %arg1[%c0, %c0_0] : memref<16x32xf32, #tpu.memory_space<vmem>>, vector<16x32xf32>
    %c0_1 = arith.constant 0 : index
    %c0_2 = arith.constant 0 : index
    %1 = vector.load %arg2[%c0_1, %c0_2] : memref<1x32xf32, #tpu.memory_space<vmem>>, vector<1x32xf32>
    %2 = arith.mulf %0, %0 : vector<16x32xf32>
    %cst = arith.constant dense<0.000000e+00> : vector<16xf32>
    %3 = vector.multi_reduction <add>, %2, %cst [1] : vector<16x32xf32> to vector<16xf32>
    %4 = vector.shape_cast %3 : vector<16xf32> to vector<16x1xf32>
    %cst_3 = arith.constant 3.200000e+01 : f32
    %5 = vector.broadcast %cst_3 : f32 to vector<16x1xf32>
    %6 = arith.divf %4, %5 : vector<16x1xf32>
    %cst_4 = arith.constant 9.99999974E-6 : f32
    %7 = vector.broadcast %cst_4 : f32 to vector<16x1xf32>
    %8 = arith.addf %6, %7 : vector<16x1xf32>
    %9 = math.rsqrt %8 : vector<16x1xf32>
    %10 = vector.broadcast %9 : vector<16x1xf32> to vector<16x32xf32>
    %11 = arith.mulf %0, %10 : vector<16x32xf32>
    %12 = vector.broadcast %1 : vector<1x32xf32> to vector<16x32xf32>
    %13 = arith.mulf %11, %12 : vector<16x32xf32>
    %c0_5 = arith.constant 0 : index
    %c0_6 = arith.constant 0 : index
    %14 = vector.load %arg3[%c0_5, %c0_6] : memref<32x160xf32, #tpu.memory_space<vmem>>, vector<32x160xf32>
    %cst_7 = arith.constant dense<0.000000e+00> : vector<16x160xf32>
    %15 = tpu.matmul %13, %14, %cst_7 {dimension_numbers = #tpu.dot_dimension_numbers<[1], [0], [0], [1], [0, 0, 1, 1], [], []>} : vector<16x32xf32>, vector<32x160xf32>, vector<16x160xf32> -> vector<16x160xf32>
    %16 = vector.extract_strided_slice %15 {offsets = [0, 0], sizes = [16, 32], strides = [1, 1]} : vector<16x160xf32> to vector<16x32xf32>
    %17 = vector.extract_strided_slice %15 {offsets = [0, 32], sizes = [16, 32], strides = [1, 1]} : vector<16x160xf32> to vector<16x32xf32>
    %18 = vector.extract_strided_slice %15 {offsets = [0, 64], sizes = [16, 32], strides = [1, 1]} : vector<16x160xf32> to vector<16x32xf32>
    %19 = vector.extract_strided_slice %15 {offsets = [0, 96], sizes = [16, 32], strides = [1, 1]} : vector<16x160xf32> to vector<16x32xf32>
    %20 = vector.extract_strided_slice %15 {offsets = [0, 128], sizes = [16, 32], strides = [1, 1]} : vector<16x160xf32> to vector<16x32xf32>
    %c0_8 = arith.constant 0 : index
    %c0_9 = arith.constant 0 : index
    %21 = vector.load %arg7[%c0_8, %c0_9] : memref<16x32xf32, #tpu.memory_space<vmem>>, vector<16x32xf32>
    %c0_10 = arith.constant 0 : index
    %c0_11 = arith.constant 0 : index
    %22 = vector.load %arg8[%c0_10, %c0_11] : memref<16x32xf32, #tpu.memory_space<vmem>>, vector<16x32xf32>
    %23 = arith.mulf %16, %21 : vector<16x32xf32>
    %24 = arith.mulf %19, %22 : vector<16x32xf32>
    %25 = arith.addf %23, %24 : vector<16x32xf32>
    %26 = arith.mulf %17, %21 : vector<16x32xf32>
    %27 = arith.mulf %20, %22 : vector<16x32xf32>
    %28 = arith.addf %26, %27 : vector<16x32xf32>
    %c0_12 = arith.constant 0 : index
    %c0_13 = arith.constant 0 : index
    %29 = vector.load %arg10[%c0_12, %c0_13] : memref<64x32xf32, #tpu.memory_space<vmem>>, vector<64x32xf32>
    %30 = tpu.concatenate %28, %28, %28, %28 in 0 : vector<16x32xf32>, vector<16x32xf32>, vector<16x32xf32>, vector<16x32xf32> -> vector<64x32xf32>
    %31 = arith.mulf %30, %29 : vector<64x32xf32>
    %32 = tpu.concatenate %18, %18, %18, %18 in 0 : vector<16x32xf32>, vector<16x32xf32>, vector<16x32xf32>, vector<16x32xf32> -> vector<64x32xf32>
    %33 = arith.mulf %32, %29 : vector<64x32xf32>
    %cst_14 = arith.constant dense<0.000000e+00> : vector<16x64xf32>
    %34 = tpu.matmul %25, %31, %cst_14 {dimension_numbers = #tpu.dot_dimension_numbers<[1], [1], [0], [0], [0, 0, 1, 0], [], []>} : vector<16x32xf32>, vector<64x32xf32>, vector<16x64xf32> -> vector<16x64xf32>
    %c0_15 = arith.constant 0 : index
    %c0_16 = arith.constant 0 : index
    %35 = vector.load %arg9[%c0_15, %c0_16] : memref<16x64xf32, #tpu.memory_space<vmem>>, vector<16x64xf32>
    %36 = arith.addf %34, %35 : vector<16x64xf32>
    %cst_17 = arith.constant dense<0xFF800000> : vector<16xf32>
    %37 = vector.multi_reduction <maximumf>, %36, %cst_17 [1] : vector<16x64xf32> to vector<16xf32>
    %38 = vector.shape_cast %37 : vector<16xf32> to vector<16x1xf32>
    %39 = vector.broadcast %38 : vector<16x1xf32> to vector<16x64xf32>
    %40 = arith.subf %36, %39 : vector<16x64xf32>
    %41 = math.exp %40 : vector<16x64xf32>
    %c0_18 = arith.constant 0 : index
    %c0_19 = arith.constant 0 : index
    %42 = vector.load %arg11[%c0_18, %c0_19] : memref<64x64xf32, #tpu.memory_space<vmem>>, vector<64x64xf32>
    %cst_20 = arith.constant dense<0.000000e+00> : vector<16x64xf32>
    %43 = tpu.matmul %41, %42, %cst_20 {dimension_numbers = #tpu.dot_dimension_numbers<[1], [0], [0], [1], [0, 0, 1, 1], [], []>} : vector<16x64xf32>, vector<64x64xf32>, vector<16x64xf32> -> vector<16x64xf32>
    %44 = tpu.reciprocal %43 {approx = true} : vector<16x64xf32> -> vector<16x64xf32>
    %45 = arith.mulf %43, %44 : vector<16x64xf32>
    %cst_21 = arith.constant 2.000000e+00 : f32
    %46 = vector.broadcast %cst_21 : f32 to vector<16x64xf32>
    %47 = arith.subf %46, %45 : vector<16x64xf32>
    %48 = arith.mulf %44, %47 : vector<16x64xf32>
    %49 = arith.mulf %41, %48 : vector<16x64xf32>
    %cst_22 = arith.constant dense<0.000000e+00> : vector<16x32xf32>
    %50 = tpu.matmul %49, %33, %cst_22 {dimension_numbers = #tpu.dot_dimension_numbers<[1], [0], [0], [1], [0, 0, 1, 1], [], []>} : vector<16x64xf32>, vector<64x32xf32>, vector<16x32xf32> -> vector<16x32xf32>
    %c0_23 = arith.constant 0 : index
    %c0_24 = arith.constant 0 : index
    %51 = vector.load %arg4[%c0_23, %c0_24] : memref<32x32xf32, #tpu.memory_space<vmem>>, vector<32x32xf32>
    %cst_25 = arith.constant dense<0.000000e+00> : vector<16x32xf32>
    %52 = tpu.matmul %50, %51, %cst_25 {dimension_numbers = #tpu.dot_dimension_numbers<[1], [0], [0], [1], [0, 0, 1, 1], [], []>} : vector<16x32xf32>, vector<32x32xf32>, vector<16x32xf32> -> vector<16x32xf32>
    %53 = arith.addf %0, %52 : vector<16x32xf32>
    %54 = arith.mulf %53, %53 : vector<16x32xf32>
    %cst_26 = arith.constant dense<0.000000e+00> : vector<16xf32>
    %55 = vector.multi_reduction <add>, %54, %cst_26 [1] : vector<16x32xf32> to vector<16xf32>
    %56 = vector.shape_cast %55 : vector<16xf32> to vector<16x1xf32>
    %cst_27 = arith.constant 3.200000e+01 : f32
    %57 = vector.broadcast %cst_27 : f32 to vector<16x1xf32>
    %58 = arith.divf %56, %57 : vector<16x1xf32>
    %cst_28 = arith.constant 9.99999974E-6 : f32
    %59 = vector.broadcast %cst_28 : f32 to vector<16x1xf32>
    %60 = arith.addf %58, %59 : vector<16x1xf32>
    %61 = math.rsqrt %60 : vector<16x1xf32>
    %62 = vector.broadcast %61 : vector<16x1xf32> to vector<16x32xf32>
    %63 = arith.mulf %53, %62 : vector<16x32xf32>
    %64 = vector.broadcast %1 : vector<1x32xf32> to vector<16x32xf32>
    %65 = arith.mulf %63, %64 : vector<16x32xf32>
    %c0_29 = arith.constant 0 : index
    %c0_30 = arith.constant 0 : index
    %66 = vector.load %arg5[%c0_29, %c0_30] : memref<32x128xf32, #tpu.memory_space<vmem>>, vector<32x128xf32>
    %cst_31 = arith.constant dense<0.000000e+00> : vector<16x128xf32>
    %67 = tpu.matmul %65, %66, %cst_31 {dimension_numbers = #tpu.dot_dimension_numbers<[1], [0], [0], [1], [0, 0, 1, 1], [], []>} : vector<16x32xf32>, vector<32x128xf32>, vector<16x128xf32> -> vector<16x128xf32>
    %68 = vector.extract_strided_slice %67 {offsets = [0, 0], sizes = [16, 64], strides = [1, 1]} : vector<16x128xf32> to vector<16x64xf32>
    %69 = vector.extract_strided_slice %67 {offsets = [0, 64], sizes = [16, 64], strides = [1, 1]} : vector<16x128xf32> to vector<16x64xf32>
    %70 = arith.negf %68 : vector<16x64xf32>
    %71 = math.exp %70 : vector<16x64xf32>
    %cst_32 = arith.constant 1.000000e+00 : f32
    %72 = vector.broadcast %cst_32 : f32 to vector<16x64xf32>
    %73 = arith.addf %72, %71 : vector<16x64xf32>
    %74 = arith.divf %72, %73 : vector<16x64xf32>
    %75 = arith.mulf %68, %74 : vector<16x64xf32>
    %76 = arith.mulf %75, %69 : vector<16x64xf32>
    %c0_33 = arith.constant 0 : index
    %c0_34 = arith.constant 0 : index
    %77 = vector.load %arg6[%c0_33, %c0_34] : memref<64x32xf32, #tpu.memory_space<vmem>>, vector<64x32xf32>
    %cst_35 = arith.constant dense<0.000000e+00> : vector<16x32xf32>
    %78 = tpu.matmul %76, %77, %cst_35 {dimension_numbers = #tpu.dot_dimension_numbers<[1], [0], [0], [1], [0, 0, 1, 1], [], []>} : vector<16x64xf32>, vector<64x32xf32>, vector<16x32xf32> -> vector<16x32xf32>
    %79 = arith.addf %53, %78 : vector<16x32xf32>
    %c0_36 = arith.constant 0 : index
    %c0_37 = arith.constant 0 : index
    %80 = vector.load %arg12[%c0_36, %c0_37] : memref<16x32xf32, #tpu.memory_space<vmem>>, vector<16x32xf32>
    tpu.vector_store %arg12[%c0_36, %c0_37], %79 {strides = array<i32>} : memref<16x32xf32, #tpu.memory_space<vmem>>, vector<16x32xf32>,
    return
  }
  func.func @transform_0(%arg0: i32) -> (i32, i32) {
    %c0_i32 = arith.constant 0 : i32
    %c0_i32_0 = arith.constant 0 : i32
    %c0_i32_1 = arith.constant 0 : i32
    return %c0_i32, %c0_i32_0 : i32, i32
  }
  func.func @transform_1(%arg0: i32) -> (i32, i32) {
    %c0_i32 = arith.constant 0 : i32
    %c0_i32_0 = arith.constant 0 : i32
    %c0_i32_1 = arith.constant 0 : i32
    return %c0_i32, %c0_i32_0 : i32, i32
  }
  func.func @transform_2(%arg0: i32) -> (i32, i32) {
    %c0_i32 = arith.constant 0 : i32
    %c0_i32_0 = arith.constant 0 : i32
    %c0_i32_1 = arith.constant 0 : i32
    return %c0_i32, %c0_i32_0 : i32, i32
  }
  func.func @transform_3(%arg0: i32) -> (i32, i32) {
    %c0_i32 = arith.constant 0 : i32
    %c0_i32_0 = arith.constant 0 : i32
    %c0_i32_1 = arith.constant 0 : i32
    return %c0_i32, %c0_i32_0 : i32, i32
  }
  func.func @transform_4(%arg0: i32) -> (i32, i32) {
    %c0_i32 = arith.constant 0 : i32
    %c0_i32_0 = arith.constant 0 : i32
    %c0_i32_1 = arith.constant 0 : i32
    return %c0_i32, %c0_i32_0 : i32, i32
  }
  func.func @transform_5(%arg0: i32) -> (i32, i32) {
    %c0_i32 = arith.constant 0 : i32
    %c0_i32_0 = arith.constant 0 : i32
    %c0_i32_1 = arith.constant 0 : i32
    return %c0_i32, %c0_i32_0 : i32, i32
  }
  func.func @transform_6(%arg0: i32) -> (i32, i32) {
    %c0_i32 = arith.constant 0 : i32
    %c0_i32_0 = arith.constant 0 : i32
    %c0_i32_1 = arith.constant 0 : i32
    return %c0_i32, %c0_i32_0 : i32, i32
  }
  func.func @transform_7(%arg0: i32) -> (i32, i32) {
    %c0_i32 = arith.constant 0 : i32
    %c0_i32_0 = arith.constant 0 : i32
    %c0_i32_1 = arith.constant 0 : i32
    return %c0_i32, %c0_i32_0 : i32, i32
  }
  func.func @transform_8(%arg0: i32) -> (i32, i32) {
    %c0_i32 = arith.constant 0 : i32
    %c0_i32_0 = arith.constant 0 : i32
    %c0_i32_1 = arith.constant 0 : i32
    return %c0_i32, %c0_i32_0 : i32, i32
  }
  func.func @transform_9(%arg0: i32) -> (i32, i32) {
    %c0_i32 = arith.constant 0 : i32
    %c0_i32_0 = arith.constant 0 : i32
    %c0_i32_1 = arith.constant 0 : i32
    return %c0_i32, %c0_i32_0 : i32, i32
  }
  func.func @transform_10(%arg0: i32) -> (i32, i32) {
    %c0_i32 = arith.constant 0 : i32
    %c0_i32_0 = arith.constant 0 : i32
    %c0_i32_1 = arith.constant 0 : i32
    return %c0_i32, %c0_i32_0 : i32, i32
  }
  func.func @transform_11(%arg0: i32) -> (i32, i32) {
    %c0_i32 = arith.constant 0 : i32
    %c0_i32_0 = arith.constant 0 : i32
    %c0_i32_1 = arith.constant 0 : i32
    return %c0_i32, %c0_i32_0 : i32, i32
  }
}

</mosaic_0001>

<llo_original>
// kernel: tpu_custom_call.1
$region0: #{tpu_custom_call.1}
  #allocation0 [shape = 'u32[]', space=smem, size = 0x4, offset = 0x4, fixed_abs, tag = 'smem constant byte address 0x4 - core index']
  #allocation1 [shape = 'u32[144,128]{1,0:T(1,128)}', space=vmem, size = 0x12000, scoped, tag = 'internal scratch']
  %s0 = inlined_call_operand.hbm [shape: f32[16,32], index: 0, kind: input, shape index: {}]
  %s1 = inlined_call_operand.vmem [shape: f32[1,32], index: 1, kind: input, shape index: {}]
  %s2 = inlined_call_operand.vmem [shape: f32[32,160], index: 2, kind: input, shape index: {}]
  %s3 = inlined_call_operand.vmem [shape: f32[32,32], index: 3, kind: input, shape index: {}]
  %s4 = inlined_call_operand.hbm [shape: f32[32,128], index: 4, kind: input, shape index: {}]
  %s5 = inlined_call_operand.vmem [shape: f32[64,32], index: 5, kind: input, shape index: {}]
  %s6 = inlined_call_operand.vmem [shape: f32[16,32], index: 6, kind: input, shape index: {}]
  %s7 = inlined_call_operand.hbm [shape: f32[16,32], index: 7, kind: input, shape index: {}]
  %s8 = inlined_call_operand.hbm [shape: f32[16,64], index: 8, kind: input, shape index: {}]
  %s9 = inlined_call_operand.vmem [shape: f32[64,32], index: 9, kind: input, shape index: {}]
  %s10 = inlined_call_operand.vmem [shape: f32[64,64], index: 10, kind: input, shape index: {}]
  %s11 = inlined_call_operand.hbm [shape: f32[16,32], index: 11, kind: output, shape index: {}]
  %s12 = sld [smem:[#allocation0]]
  $region70: #{tpu_custom_call.1} parent=0
    _
  %s14 = ssub.s32 1, %s12
  %s15 = scalar_select 0, %s14, %s12
  $region1: #{tpu_custom_call.1} parent=0
    #allocation2 [shape = 'u8[8192]{0}', space=vmem, size = 0x2000, scoped, tag = 'input window, operand 0, single buffered']
    #allocation3 [shape = 's32[1]{0}', space=sflag, size = 0x4, scoped, tag = 'scoped memory for tpu_custom_call.1']
    #allocation4 [shape = 's32[1]{0}', space=sflag, size = 0x4, scoped, tag = 'scoped memory for tpu_custom_call.1']
    #allocation5 [shape = 'u8[16384]{0}', space=vmem, size = 0x4000, scoped, tag = 'input window, operand 4, single buffered']
    #allocation6 [shape = 's32[1]{0}', space=sflag, size = 0x4, scoped, tag = 'scoped memory for tpu_custom_call.1']
    #allocation7 [shape = 'u8[8192]{0}', space=vmem, size = 0x2000, scoped, tag = 'input window, operand 7, single buffered']
    #allocation8 [shape = 'u8[8192]{0}', space=vmem, size = 0x2000, scoped, tag = 'input window, operand 8, single buffered']
    #allocation9 [shape = 's32[1]{0}', space=sflag, size = 0x4, scoped, tag = 'scoped memory for tpu_custom_call.1']
    #allocation10 [shape = 'u8[8192]{0}', space=vmem, size = 0x2000, scoped, tag = 'output window, operand 0, single buffered']
    %16 = vsyncpa [#allocation3], 0
    %17 = vsyncpa [#allocation6], 0
    %18 = vsyncpa [#allocation9], 0
    %19 = vsyncpa [#allocation4], 0
    // Predicated region
    $region2: #{tpu_custom_call.1} parent=1 // pred_check
      _
    $region3: #{tpu_custom_call.1} parent=1 // pred_check_branch
      %21 = sbr.rel (0) target = $region5
    $region4: #{tpu_custom_call.1} parent=1 // pred_region
      %s23 = ssub.s32 256, 256
      %24 = vsyncadd [#allocation3], %s23
      %s25 = sshll.u32 [#allocation2], 4
      %s26 = int_to_ptr.vmem [resolvable:$true] %s25
      %31 = dma.hbm_to_vmem [thread:$0]  %s0, 256, %s26, [#allocation3], 128, 128, 8
    $region5: #{tpu_custom_call.1} parent=1 // pred_fallthru
      _
    // Predicated region
    $region6: #{tpu_custom_call.1} parent=1 // pred_check
      _
    $region7: #{tpu_custom_call.1} parent=1 // pred_check_branch
      %33 = sbr.rel (0) target = $region9
    $region8: #{tpu_custom_call.1} parent=1 // pred_region
      _
    $region9: #{tpu_custom_call.1} parent=1 // pred_fallthru
      _
    // Predicated region
    $region10: #{tpu_custom_call.1} parent=1 // pred_check
      _
    $region11: #{tpu_custom_call.1} parent=1 // pred_check_branch
      %35 = sbr.rel (0) target = $region13
    $region12: #{tpu_custom_call.1} parent=1 // pred_region
      _
    $region13: #{tpu_custom_call.1} parent=1 // pred_fallthru
      _
    // Predicated region
    $region14: #{tpu_custom_call.1} parent=1 // pred_check
      _
    $region15: #{tpu_custom_call.1} parent=1 // pred_check_branch
      %37 = sbr.rel (0) target = $region17
    $region16: #{tpu_custom_call.1} parent=1 // pred_region
      _
    $region17: #{tpu_custom_call.1} parent=1 // pred_fallthru
      _
    // Predicated region
    $region18: #{tpu_custom_call.1} parent=1 // pred_check
      _
    $region19: #{tpu_custom_call.1} parent=1 // pred_check_branch
      %39 = sbr.rel (0) target = $region21
    $region20: #{tpu_custom_call.1} parent=1 // pred_region
      %s41 = ssub.s32 512, 512
      %42 = vsyncadd [#allocation6], %s41
      %s43 = sshll.u32 [#allocation5], 4
      %s44 = int_to_ptr.vmem [resolvable:$true] %s43
      %49 = dma.hbm_to_vmem [thread:$0]  %s4, 512, %s44, [#allocation6], 128, 128, 8
    $region21: #{tpu_custom_call.1} parent=1 // pred_fallthru
      _
    // Predicated region
    $region22: #{tpu_custom_call.1} parent=1 // pred_check
      _
    $region23: #{tpu_custom_call.1} parent=1 // pred_check_branch
      %51 = sbr.rel (0) target = $region25
    $region24: #{tpu_custom_call.1} parent=1 // pred_region
      _
    $region25: #{tpu_custom_call.1} parent=1 // pred_fallthru
      _
    // Predicated region
    $region26: #{tpu_custom_call.1} parent=1 // pred_check
      _
    $region27: #{tpu_custom_call.1} parent=1 // pred_check_branch
      %53 = sbr.rel (0) target = $region29
    $region28: #{tpu_custom_call.1} parent=1 // pred_region
      _
    $region29: #{tpu_custom_call.1} parent=1 // pred_fallthru
      _
    // Predicated region
    $region30: #{tpu_custom_call.1} parent=1 // pred_check
      _
    $region31: #{tpu_custom_call.1} parent=1 // pred_check_branch
      %55 = sbr.rel (0) target = $region33
    $region32: #{tpu_custom_call.1} parent=1 // pred_region
      %s57 = ssub.s32 256, 256
      %58 = vsyncadd [#allocation6], %s57
      %s59 = sshll.u32 [#allocation7], 4
      %s60 = int_to_ptr.vmem [resolvable:$true] %s59
      %65 = dma.hbm_to_vmem [thread:$0]  %s7, 256, %s60, [#allocation6], 128, 128, 8
    $region33: #{tpu_custom_call.1} parent=1 // pred_fallthru
      _
    // Predicated region
    $region34: #{tpu_custom_call.1} parent=1 // pred_check
      _
    $region35: #{tpu_custom_call.1} parent=1 // pred_check_branch
      %67 = sbr.rel (0) target = $region37
    $region36: #{tpu_custom_call.1} parent=1 // pred_region
      %s69 = ssub.s32 256, 256
      %70 = vsyncadd [#allocation9], %s69
      %s71 = sshll.u32 [#allocation8], 4
      %s72 = int_to_ptr.vmem [resolvable:$true] %s71
      %77 = dma.hbm_to_vmem [thread:$0]  %s8, 256, %s72, [#allocation9], 128, 128, 8
    $region37: #{tpu_custom_call.1} parent=1 // pred_fallthru
      _
    // Predicated region
    $region38: #{tpu_custom_call.1} parent=1 // pred_check
      _
    $region39: #{tpu_custom_call.1} parent=1 // pred_check_branch
      %79 = sbr.rel (0) target = $region41
    $region40: #{tpu_custom_call.1} parent=1 // pred_region
      _
    $region41: #{tpu_custom_call.1} parent=1 // pred_fallthru
      _
    // Predicated region
    $region42: #{tpu_custom_call.1} parent=1 // pred_check
      _
    $region43: #{tpu_custom_call.1} parent=1 // pred_check_branch
      %81 = sbr.rel (0) target = $region45
    $region44: #{tpu_custom_call.1} parent=1 // pred_region
      _
    $region45: #{tpu_custom_call.1} parent=1 // pred_fallthru
      _
    // Predicated region
    $region46: #{tpu_custom_call.1} parent=1 // pred_check
      _
    $region47: #{tpu_custom_call.1} parent=1 // pred_check_branch
      %83 = sbr.rel (0) target = $region49
    $region48: #{tpu_custom_call.1} parent=1 // pred_region
      %84 = dma.done [#allocation3], 256
    $region49: #{tpu_custom_call.1} parent=1 // pred_fallthru
      _
    // Predicated region
    $region50: #{tpu_custom_call.1} parent=1 // pred_check
      _
    $region51: #{tpu_custom_call.1} parent=1 // pred_check_branch
      %86 = sbr.rel (0) target = $region53
    $region52: #{tpu_custom_call.1} parent=1 // pred_region
      %87 = dma.done [#allocation6], 512
    $region53: #{tpu_custom_call.1} parent=1 // pred_fallthru
      _
    // Predicated region
    $region54: #{tpu_custom_call.1} parent=1 // pred_check
      _
    $region55: #{tpu_custom_call.1} parent=1 // pred_check_branch
      %89 = sbr.rel (0) target = $region57
    $region56: #{tpu_custom_call.1} parent=1 // pred_region
      %90 = dma.done [#allocation6], 256
    $region57: #{tpu_custom_call.1} parent=1 // pred_fallthru
      _
    // Predicated region
    $region58: #{tpu_custom_call.1} parent=1 // pred_check
      _
    $region59: #{tpu_custom_call.1} parent=1 // pred_check_branch
      %92 = sbr.rel (0) target = $region61
    $region60: #{tpu_custom_call.1} parent=1 // pred_region
      %93 = dma.done [#allocation9], 256
    $region61: #{tpu_custom_call.1} parent=1 // pred_fallthru
      _
    %v94 = vld [vmem:[#allocation2] sm:$0xff]
    %v95 = vld [vmem:[#allocation2 + $0x8] sm:$0xff]
    %v96 = vld [vmem:[%s1] sm:$0x1]
    %v97 = vmul.f32 %v94, %v94
    %v98 = vmul.f32 %v95, %v95
    %vm99 = vcmask 261120
    %v100 = vsel %vm99, %v97, 0.0
    %101 = vadd.xlane.f32.xlu0 %v100
    %v102 = vpop.xlane.xlu0 %101
    %v103 = vsel %vm99, %v98, 0.0
    %104 = vadd.xlane.f32.xlu0 %v103
    %v105 = vpop.xlane.xlu0 %104
    %v106 = vrcp.pop 32.0
    %v107 = vmul.f32 %v102, %v106
    %v108 = vmul.f32 %v105, %v106
    %v109 = vadd.f32 %v107, 1e-05
    %v110 = vadd.f32 %v108, 1e-05
    %v111 = vrsqrt.pop %v109
    %v112 = vrsqrt.pop %v110
    %v113 = vmul.f32 %v94, %v111
    %v114 = vmul.f32 %v95, %v112
    %v116 = vlaneseq
    %v117 = vshrl.u32 %v116, 7
    %v118 = vsub.s32 0, %v117
    %v119 = vrot.slane %v96, %v118
    %v121 = vmul.f32 %v113, %v119
    %v122 = vmul.f32 %v114, %v119
    %v123 = vld [vmem:[%s2] sm:$0xff]
    %v124 = vld [vmem:[%s2 + $0x8] sm:$0xff]
    %v125 = vld [vmem:[%s2 + $0x10] sm:$0xff]
    %v126 = vld [vmem:[%s2 + $0x18] sm:$0xff]
    %v127 = vld [vmem:[%s2 + $0x20] sm:$0xff]
    %v128 = vld [vmem:[%s2 + $0x28] sm:$0xff]
    %v129 = vld [vmem:[%s2 + $0x30] sm:$0xff]
    %v130 = vld [vmem:[%s2 + $0x38] sm:$0xff]
    %v132 = vsel %vm99, %v121, 0
    %v135 = vsel %vm99, %v122, 0
    %137 = vmatprep.subr.mxu0 %v124
    %138 = vmatpush1.msra.mxu0 %v123
    %139 = vmatprep.subr.mxu0 %v126
    %140 = vmatpush1.msra.mxu0 %v125
    %141 = vmatprep.subr.mxu0 %v128
    %142 = vmatpush1.msra.mxu0 %v127
    %143 = vmatprep.subr.mxu0 %v130
    %144 = vmatpush1.msra.mxu0 %v129
    %145 = vmatprep.subr.mxu0 0.0
    %146 = vmatpush1.msra.mxu0 0.0
    %147 = vmatprep.subr.mxu0 0.0
    %148 = vmatpush1.msra.mxu0 0.0
    %149 = vmatprep.subr.mxu0 0.0
    %150 = vmatpush1.msra.mxu0 0.0
    %151 = vmatprep.subr.mxu0 0.0
    %152 = vmatpush1.msra.mxu0 0.0
    %153 = vmatprep.subr.mxu0 0.0
    %154 = vmatpush1.msra.mxu0 0.0
    %155 = vmatprep.subr.mxu0 0.0
    %156 = vmatpush1.msra.mxu0 0.0
    %157 = vmatprep.subr.mxu0 0.0
    %158 = vmatpush1.msra.mxu0 0.0
    %159 = vmatprep.subr.mxu0 0.0
    %160 = vmatpush1.msra.mxu0 0.0
    %161 = vmatprep.subr.mxu0 0.0
    %162 = vmatpush1.msra.mxu0 0.0
    %163 = vmatprep.subr.mxu0 0.0
    %164 = vmatpush1.msra.mxu0 0.0
    %165 = vmatprep.subr.mxu0 0.0
    %166 = vmatpush1.msra.mxu0 0.0
    %167 = vmatprep.subr.mxu0 0.0
    %168 = vmatpush1.msra.mxu0 0.0
    %169 = vmatprep.subr.mxu0 0.0
    %170 = vmatpush1.msra.mxu0 0.0
    %171 = vmatprep.subr.mxu0 0.0
    %172 = vmatpush1.msra.mxu0 0.0
    %173 = vmatprep.subr.mxu0 0.0
    %174 = vmatpush1.msra.mxu0 0.0
    %175 = vmatprep.subr.mxu0 0.0
    %176 = vmatpush1.msra.mxu0 0.0
    %177 = vmatprep.subr.mxu0 0.0
    %178 = vmatpush1.msra.mxu0 0.0
    %179 = vmatprep.subr.mxu0 0.0
    %180 = vmatpush1.msra.mxu0 0.0
    %181 = vmatprep.subr.mxu0 0.0
    %182 = vmatpush1.msra.mxu0 0.0
    %183 = vmatprep.subr.mxu0 0.0
    %184 = vmatpush1.msra.mxu0 0.0
    %185 = vmatprep.subr.mxu0 0.0
    %186 = vmatpush1.msra.mxu0 0.0
    %187 = vmatprep.subr.mxu0 0.0
    %188 = vmatpush1.msra.mxu0 0.0
    %189 = vmatprep.subr.mxu0 0.0
    %190 = vmatpush1.msra.mxu0 0.0
    %191 = vmatprep.subr.mxu0 0.0
    %192 = vmatpush1.msra.mxu0 0.0
    %193 = vmatprep.subr.mxu0 0.0
    %194 = vmatpush1.msra.mxu0 0.0
    %195 = vmatprep.subr.mxu0 0.0
    %196 = vmatpush1.msra.mxu0 0.0
    %197 = vmatprep.subr.mxu0 0.0
    %198 = vmatpush1.msra.mxu0 0.0
    %199 = vmatprep.subr.mxu0 0.0
    %200 = vmatpush1.msra.mxu0 0.0
    %201 = vmatprep.mubr.f32.mxu0 0.0
    %202 = vmatmul.mubr.f32.gmra.mrb[0].mxu0 %v132
    %v203 = vpop.f32.mrb[0].mxu0
    %v204 = vadd.f32 0.0, %v203
    %v205 = vpop.f32.mrb[0].mxu0
    %v206 = vadd.f32 0.0, %v205
    %207 = vmatprep.mubr.f32.mxu0 0.0
    %208 = vmatmul.mubr.f32.gmra.mrb[0].mxu0 %v135
    %v209 = vpop.f32.mrb[0].mxu0
    %v210 = vadd.f32 0.0, %v209
    %v211 = vpop.f32.mrb[0].mxu0
    %v212 = vadd.f32 0.0, %v211
    %213 = vdwg.mxu0
    %v214 = vld [vmem:[%s6] sm:$0xff]
    %v215 = vld [vmem:[%s6 + $0x8] sm:$0xff]
    %v216 = vld [vmem:[#allocation7] sm:$0xff]
    %v217 = vld [vmem:[#allocation7 + $0x8] sm:$0xff]
    %v218 = vmul.f32 %v204, %v214
    %v219 = vmul.f32 %v210, %v215
    %222 = vrot.lane.b32.xlu0 %v216, 96
    %v223 = vpop.permute.xlu0 %222
    %224 = vrot.lane.b32.xlu0 %v217, 96
    %v225 = vpop.permute.xlu0 %224
    %v228 = vmul.f32 %v204, %v223
    %v229 = vmul.f32 %v210, %v225
    %232 = vrot.lane.b32.xlu0 %v228, 32
    %v233 = vpop.permute.xlu0 %232
    %234 = vrot.lane.b32.xlu0 %v229, 32
    %v235 = vpop.permute.xlu0 %234
    %v238 = vadd.f32 %v218, %v233
    %v239 = vadd.f32 %v219, %v235
    %242 = vrot.lane.b32.xlu0 %v214, 32
    %v243 = vpop.permute.xlu0 %242
    %244 = vrot.lane.b32.xlu0 %v215, 32
    %v245 = vpop.permute.xlu0 %244
    %v248 = vmul.f32 %v204, %v243
    %v249 = vmul.f32 %v210, %v245
    %v250 = vmul.f32 %v206, %v216
    %v251 = vmul.f32 %v212, %v217
    %254 = vrot.lane.b32.xlu0 %v250, 32
    %v255 = vpop.permute.xlu0 %254
    %256 = vrot.lane.b32.xlu0 %v251, 32
    %v257 = vpop.permute.xlu0 %256
    %v260 = vadd.f32 %v248, %v255
    %v261 = vadd.f32 %v249, %v257
    %v262 = vld [vmem:[%s9] sm:$0xff]
    %v263 = vld [vmem:[%s9 + $0x8] sm:$0xff]
    %v264 = vld [vmem:[%s9 + $0x10] sm:$0xff]
    %v265 = vld [vmem:[%s9 + $0x18] sm:$0xff]
    %v266 = vld [vmem:[%s9 + $0x20] sm:$0xff]
    %v267 = vld [vmem:[%s9 + $0x28] sm:$0xff]
    %v268 = vld [vmem:[%s9 + $0x30] sm:$0xff]
    %v269 = vld [vmem:[%s9 + $0x38] sm:$0xff]
    %278 = vrot.lane.b32.xlu0 %v262, 32
    %v279 = vpop.permute.xlu0 %278
    %280 = vrot.lane.b32.xlu0 %v263, 32
    %v281 = vpop.permute.xlu0 %280
    %282 = vrot.lane.b32.xlu0 %v264, 32
    %v283 = vpop.permute.xlu0 %282
    %284 = vrot.lane.b32.xlu0 %v265, 32
    %v285 = vpop.permute.xlu0 %284
    %286 = vrot.lane.b32.xlu0 %v266, 32
    %v287 = vpop.permute.xlu0 %286
    %288 = vrot.lane.b32.xlu0 %v267, 32
    %v289 = vpop.permute.xlu0 %288
    %290 = vrot.lane.b32.xlu0 %v268, 32
    %v291 = vpop.permute.xlu0 %290
    %292 = vrot.lane.b32.xlu0 %v269, 32
    %v293 = vpop.permute.xlu0 %292
    %v302 = vmul.f32 %v260, %v279
    %v303 = vmul.f32 %v261, %v281
    %v304 = vmul.f32 %v260, %v283
    %v305 = vmul.f32 %v261, %v285
    %v306 = vmul.f32 %v260, %v287
    %v307 = vmul.f32 %v261, %v289
    %v308 = vmul.f32 %v260, %v291
    %v309 = vmul.f32 %v261, %v293
    %310 = vrot.lane.b32.xlu0 %v262, 64
    %v311 = vpop.permute.xlu0 %310
    %312 = vrot.lane.b32.xlu0 %v263, 64
    %v313 = vpop.permute.xlu0 %312
    %314 = vrot.lane.b32.xlu0 %v264, 64
    %v315 = vpop.permute.xlu0 %314
    %316 = vrot.lane.b32.xlu0 %v265, 64
    %v317 = vpop.permute.xlu0 %316
    %318 = vrot.lane.b32.xlu0 %v266, 64
    %v319 = vpop.permute.xlu0 %318
    %320 = vrot.lane.b32.xlu0 %v267, 64
    %v321 = vpop.permute.xlu0 %320
    %322 = vrot.lane.b32.xlu0 %v268, 64
    %v323 = vpop.permute.xlu0 %322
    %324 = vrot.lane.b32.xlu0 %v269, 64
    %v325 = vpop.permute.xlu0 %324
    %v334 = vmul.f32 %v204, %v311
    %v335 = vmul.f32 %v210, %v313
    %v336 = vmul.f32 %v204, %v315
    %v337 = vmul.f32 %v210, %v317
    %v338 = vmul.f32 %v204, %v319
    %v339 = vmul.f32 %v210, %v321
    %v340 = vmul.f32 %v204, %v323
    %v341 = vmul.f32 %v210, %v325
    %v342 = vld [vmem:[#allocation8] sm:$0xff]
    %v343 = vld [vmem:[#allocation8 + $0x8] sm:$0xff]
    %352 = vrot.lane.b32.xlu0 %v302, 96
    %v353 = vpop.permute.xlu0 %352
    %354 = vrot.lane.b32.xlu0 %v303, 96
    %v355 = vpop.permute.xlu0 %354
    %356 = vrot.lane.b32.xlu0 %v304, 96
    %v357 = vpop.permute.xlu0 %356
    %358 = vrot.lane.b32.xlu0 %v305, 96
    %v359 = vpop.permute.xlu0 %358
    %360 = vrot.lane.b32.xlu0 %v306, 96
    %v361 = vpop.permute.xlu0 %360
    %362 = vrot.lane.b32.xlu0 %v307, 96
    %v363 = vpop.permute.xlu0 %362
    %364 = vrot.lane.b32.xlu0 %v308, 96
    %v365 = vpop.permute.xlu0 %364
    %366 = vrot.lane.b32.xlu0 %v309, 96
    %v367 = vpop.permute.xlu0 %366
    %v369 = vsel %vm99, %v238, 0
    %v372 = vsel %vm99, %v239, 0
    %v374 = vsel %vm99, %v353, 0
    %v376 = vsel %vm99, %v355, 0
    %v378 = vsel %vm99, %v357, 0
    %v380 = vsel %vm99, %v359, 0
    %v382 = vsel %vm99, %v361, 0
    %v384 = vsel %vm99, %v363, 0
    %v386 = vsel %vm99, %v365, 0
    %v388 = vsel %vm99, %v367, 0
    %390 = vmatprep.subr.mxu0 0.0
    %391 = vmatpush1.xpose.msra.mxu0 %v374
    %392 = vmatprep.subr.mxu0 0.0
    %393 = vmatpush1.xpose.msra.mxu0 %v376
    %394 = vmatprep.subr.mxu0 0.0
    %395 = vmatpush1.xpose.msra.mxu0 %v378
    %396 = vmatprep.subr.mxu0 0.0
    %397 = vmatpush1.xpose.msra.mxu0 %v380
    %398 = vmatprep.subr.mxu0 0.0
    %399 = vmatpush1.xpose.msra.mxu0 %v382
    %400 = vmatprep.subr.mxu0 0.0
    %401 = vmatpush1.xpose.msra.mxu0 %v384
    %402 = vmatprep.subr.mxu0 0.0
    %403 = vmatpush1.xpose.msra.mxu0 %v386
    %404 = vmatprep.subr.mxu0 0.0
    %405 = vmatpush1.xpose.msra.mxu0 %v388
    %406 = vmatprep.subr.mxu0 0.0
    %407 = vmatpush1.xpose.msra.mxu0 0.0
    %408 = vmatprep.subr.mxu0 0.0
    %409 = vmatpush1.xpose.msra.mxu0 0.0
    %410 = vmatprep.subr.mxu0 0.0
    %411 = vmatpush1.xpose.msra.mxu0 0.0
    %412 = vmatprep.subr.mxu0 0.0
    %413 = vmatpush1.xpose.msra.mxu0 0.0
    %414 = vmatprep.subr.mxu0 0.0
    %415 = vmatpush1.xpose.msra.mxu0 0.0
    %416 = vmatprep.subr.mxu0 0.0
    %417 = vmatpush1.xpose.msra.mxu0 0.0
    %418 = vmatprep.subr.mxu0 0.0
    %419 = vmatpush1.xpose.msra.mxu0 0.0
    %420 = vmatprep.subr.mxu0 0.0
    %421 = vmatpush1.xpose.msra.mxu0 0.0
    %422 = vmatprep.subr.mxu0 0.0
    %423 = vmatpush1.xpose.msra.mxu0 0.0
    %424 = vmatprep.subr.mxu0 0.0
    %425 = vmatpush1.xpose.msra.mxu0 0.0
    %426 = vmatprep.subr.mxu0 0.0
    %427 = vmatpush1.xpose.msra.mxu0 0.0
    %428 = vmatprep.subr.mxu0 0.0
    %429 = vmatpush1.xpose.msra.mxu0 0.0
    %430 = vmatprep.subr.mxu0 0.0
    %431 = vmatpush1.xpose.msra.mxu0 0.0
    %432 = vmatprep.subr.mxu0 0.0
    %433 = vmatpush1.xpose.msra.mxu0 0.0
    %434 = vmatprep.subr.mxu0 0.0
    %435 = vmatpush1.xpose.msra.mxu0 0.0
    %436 = vmatprep.subr.mxu0 0.0
    %437 = vmatpush1.xpose.msra.mxu0 0.0
    %438 = vmatprep.subr.mxu0 0.0
    %439 = vmatpush1.xpose.msra.mxu0 0.0
    %440 = vmatprep.subr.mxu0 0.0
    %441 = vmatpush1.xpose.msra.mxu0 0.0
    %442 = vmatprep.subr.mxu0 0.0
    %443 = vmatpush1.xpose.msra.mxu0 0.0
    %444 = vmatprep.subr.mxu0 0.0
    %445 = vmatpush1.xpose.msra.mxu0 0.0
    %446 = vmatprep.subr.mxu0 0.0
    %447 = vmatpush1.xpose.msra.mxu0 0.0
    %448 = vmatprep.subr.mxu0 0.0
    %449 = vmatpush1.xpose.msra.mxu0 0.0
    %450 = vmatprep.subr.mxu0 0.0
    %451 = vmatpush1.xpose.msra.mxu0 0.0
    %452 = vmatprep.subr.mxu0 0.0
    %453 = vmatpush1.xpose.msra.mxu0 0.0
    %454 = vmatprep.mubr.f32.mxu0 0.0
    %455 = vmatmul.mubr.f32.gmra.mrb[0].mxu0 %v369
    %v456 = vpop.f32.mrb[0].mxu0
    %v457 = vadd.f32 %v342, %v456
    %v458 = vpop.f32.mrb[0].mxu0
    %459 = vmatprep.mubr.f32.mxu0 0.0
    %460 = vmatmul.mubr.f32.gmra.mrb[0].mxu0 %v372
    %v461 = vpop.f32.mrb[0].mxu0
    %v462 = vadd.f32 %v343, %v461
    %v463 = vpop.f32.mrb[0].mxu0
    %464 = vdwg.mxu0
    %vm465 = vcmask 523264
    %v466 = vsel %vm465, %v457, -inf
    %467 = vmax.xlane.f32.xlu0 %v466
    %v468 = vpop.xlane.xlu0 %467
    %v469 = vsel %vm465, %v462, -inf
    %470 = vmax.xlane.f32.xlu0 %v469
    %v471 = vpop.xlane.xlu0 %470
    %v472 = vsub.f32 %v457, %v468
    %v473 = vsub.f32 %v462, %v471
    %v474 = vmul.f32 %v472, 1.442695
    %v475 = vpow.pop %v474
    %v476 = vmul.f32 %v473, 1.442695
    %v477 = vpow.pop %v476
    %v478 = vld [vmem:[%s10] sm:$0xff]
    %v479 = vld [vmem:[%s10 + $0x8] sm:$0xff]
    %v480 = vld [vmem:[%s10 + $0x10] sm:$0xff]
    %v481 = vld [vmem:[%s10 + $0x18] sm:$0xff]
    %v482 = vld [vmem:[%s10 + $0x20] sm:$0xff]
    %v483 = vld [vmem:[%s10 + $0x28] sm:$0xff]
    %v484 = vld [vmem:[%s10 + $0x30] sm:$0xff]
    %v485 = vld [vmem:[%s10 + $0x38] sm:$0xff]
    %v487 = vsel %vm465, %v475, 0
    %v490 = vsel %vm465, %v477, 0
    %492 = vmatprep.subr.mxu0 0.0
    %493 = vmatpush1.msra.mxu0 %v478
    %494 = vmatprep.subr.mxu0 0.0
    %495 = vmatpush1.msra.mxu0 %v479
    %496 = vmatprep.subr.mxu0 0.0
    %497 = vmatpush1.msra.mxu0 %v480
    %498 = vmatprep.subr.mxu0 0.0
    %499 = vmatpush1.msra.mxu0 %v481
    %500 = vmatprep.subr.mxu0 0.0
    %501 = vmatpush1.msra.mxu0 %v482
    %502 = vmatprep.subr.mxu0 0.0
    %503 = vmatpush1.msra.mxu0 %v483
    %504 = vmatprep.subr.mxu0 0.0
    %505 = vmatpush1.msra.mxu0 %v484
    %506 = vmatprep.subr.mxu0 0.0
    %507 = vmatpush1.msra.mxu0 %v485
    %508 = vmatprep.subr.mxu0 0.0
    %509 = vmatpush1.msra.mxu0 0.0
    %510 = vmatprep.subr.mxu0 0.0
    %511 = vmatpush1.msra.mxu0 0.0
    %512 = vmatprep.subr.mxu0 0.0
    %513 = vmatpush1.msra.mxu0 0.0
    %514 = vmatprep.subr.mxu0 0.0
    %515 = vmatpush1.msra.mxu0 0.0
    %516 = vmatprep.subr.mxu0 0.0
    %517 = vmatpush1.msra.mxu0 0.0
    %518 = vmatprep.subr.mxu0 0.0
    %519 = vmatpush1.msra.mxu0 0.0
    %520 = vmatprep.subr.mxu0 0.0
    %521 = vmatpush1.msra.mxu0 0.0
    %522 = vmatprep.subr.mxu0 0.0
    %523 = vmatpush1.msra.mxu0 0.0
    %524 = vmatprep.subr.mxu0 0.0
    %525 = vmatpush1.msra.mxu0 0.0
    %526 = vmatprep.subr.mxu0 0.0
    %527 = vmatpush1.msra.mxu0 0.0
    %528 = vmatprep.subr.mxu0 0.0
    %529 = vmatpush1.msra.mxu0 0.0
    %530 = vmatprep.subr.mxu0 0.0
    %531 = vmatpush1.msra.mxu0 0.0
    %532 = vmatprep.subr.mxu0 0.0
    %533 = vmatpush1.msra.mxu0 0.0
    %534 = vmatprep.subr.mxu0 0.0
    %535 = vmatpush1.msra.mxu0 0.0
    %536 = vmatprep.subr.mxu0 0.0
    %537 = vmatpush1.msra.mxu0 0.0
    %538 = vmatprep.subr.mxu0 0.0
    %539 = vmatpush1.msra.mxu0 0.0
    %540 = vmatprep.subr.mxu0 0.0
    %541 = vmatpush1.msra.mxu0 0.0
    %542 = vmatprep.subr.mxu0 0.0
    %543 = vmatpush1.msra.mxu0 0.0
    %544 = vmatprep.subr.mxu0 0.0
    %545 = vmatpush1.msra.mxu0 0.0
    %546 = vmatprep.subr.mxu0 0.0
    %547 = vmatpush1.msra.mxu0 0.0
    %548 = vmatprep.subr.mxu0 0.0
    %549 = vmatpush1.msra.mxu0 0.0
    %550 = vmatprep.subr.mxu0 0.0
    %551 = vmatpush1.msra.mxu0 0.0
    %552 = vmatprep.subr.mxu0 0.0
    %553 = vmatpush1.msra.mxu0 0.0
    %554 = vmatprep.subr.mxu0 0.0
    %555 = vmatpush1.msra.mxu0 0.0
    %556 = vmatprep.mubr.f32.mxu0 0.0
    %557 = vmatmul.mubr.f32.gmra.mrb[0].mxu0 %v487
    %v558 = vpop.f32.mrb[0].mxu0
    %v559 = vadd.f32 0.0, %v558
    %v560 = vpop.f32.mrb[0].mxu0
    %561 = vmatprep.mubr.f32.mxu0 0.0
    %562 = vmatmul.mubr.f32.gmra.mrb[0].mxu0 %v490
    %v563 = vpop.f32.mrb[0].mxu0
    %v564 = vadd.f32 0.0, %v563
    %v565 = vpop.f32.mrb[0].mxu0
    %566 = vdwg.mxu0
    %v567 = vrcp.pop %v559
    %v568 = vrcp.pop %v564
    %v569 = vmul.f32 %v559, %v567
    %v570 = vmul.f32 %v564, %v568
    %v571 = vsub.f32 2.0, %v569
    %v572 = vsub.f32 2.0, %v570
    %v573 = vmul.f32 %v567, %v571
    %v574 = vmul.f32 %v568, %v572
    %v575 = vmul.f32 %v475, %v573
    %v576 = vmul.f32 %v477, %v574
    %585 = vrot.lane.b32.xlu0 %v334, 64
    %v586 = vpop.permute.xlu0 %585
    %587 = vrot.lane.b32.xlu0 %v335, 64
    %v588 = vpop.permute.xlu0 %587
    %589 = vrot.lane.b32.xlu0 %v336, 64
    %v590 = vpop.permute.xlu0 %589
    %591 = vrot.lane.b32.xlu0 %v337, 64
    %v592 = vpop.permute.xlu0 %591
    %593 = vrot.lane.b32.xlu0 %v338, 64
    %v594 = vpop.permute.xlu0 %593
    %595 = vrot.lane.b32.xlu0 %v339, 64
    %v596 = vpop.permute.xlu0 %595
    %597 = vrot.lane.b32.xlu0 %v340, 64
    %v598 = vpop.permute.xlu0 %597
    %599 = vrot.lane.b32.xlu0 %v341, 64
    %v600 = vpop.permute.xlu0 %599
    %v610 = vsel %vm465, %v575, 0
    %v613 = vsel %vm465, %v576, 0
    %615 = vmatprep.subr.mxu0 0.0
    %616 = vmatpush1.msra.mxu0 %v586
    %617 = vmatprep.subr.mxu0 0.0
    %618 = vmatpush1.msra.mxu0 %v588
    %619 = vmatprep.subr.mxu0 0.0
    %620 = vmatpush1.msra.mxu0 %v590
    %621 = vmatprep.subr.mxu0 0.0
    %622 = vmatpush1.msra.mxu0 %v592
    %623 = vmatprep.subr.mxu0 0.0
    %624 = vmatpush1.msra.mxu0 %v594
    %625 = vmatprep.subr.mxu0 0.0
    %626 = vmatpush1.msra.mxu0 %v596
    %627 = vmatprep.subr.mxu0 0.0
    %628 = vmatpush1.msra.mxu0 %v598
    %629 = vmatprep.subr.mxu0 0.0
    %630 = vmatpush1.msra.mxu0 %v600
    %631 = vmatprep.subr.mxu0 0.0
    %632 = vmatpush1.msra.mxu0 0.0
    %633 = vmatprep.subr.mxu0 0.0
    %634 = vmatpush1.msra.mxu0 0.0
    %635 = vmatprep.subr.mxu0 0.0
    %636 = vmatpush1.msra.mxu0 0.0
    %637 = vmatprep.subr.mxu0 0.0
    %638 = vmatpush1.msra.mxu0 0.0
    %639 = vmatprep.subr.mxu0 0.0
    %640 = vmatpush1.msra.mxu0 0.0
    %641 = vmatprep.subr.mxu0 0.0
    %642 = vmatpush1.msra.mxu0 0.0
    %643 = vmatprep.subr.mxu0 0.0
    %644 = vmatpush1.msra.mxu0 0.0
    %645 = vmatprep.subr.mxu0 0.0
    %646 = vmatpush1.msra.mxu0 0.0
    %647 = vmatprep.subr.mxu0 0.0
    %648 = vmatpush1.msra.mxu0 0.0
    %649 = vmatprep.subr.mxu0 0.0
    %650 = vmatpush1.msra.mxu0 0.0
    %651 = vmatprep.subr.mxu0 0.0
    %652 = vmatpush1.msra.mxu0 0.0
    %653 = vmatprep.subr.mxu0 0.0
    %654 = vmatpush1.msra.mxu0 0.0
    %655 = vmatprep.subr.mxu0 0.0
    %656 = vmatpush1.msra.mxu0 0.0
    %657 = vmatprep.subr.mxu0 0.0
    %658 = vmatpush1.msra.mxu0 0.0
    %659 = vmatprep.subr.mxu0 0.0
    %660 = vmatpush1.msra.mxu0 0.0
    %661 = vmatprep.subr.mxu0 0.0
    %662 = vmatpush1.msra.mxu0 0.0
    %663 = vmatprep.subr.mxu0 0.0
    %664 = vmatpush1.msra.mxu0 0.0
    %665 = vmatprep.subr.mxu0 0.0
    %666 = vmatpush1.msra.mxu0 0.0
    %667 = vmatprep.subr.mxu0 0.0
    %668 = vmatpush1.msra.mxu0 0.0
    %669 = vmatprep.subr.mxu0 0.0
    %670 = vmatpush1.msra.mxu0 0.0
    %671 = vmatprep.subr.mxu0 0.0
    %672 = vmatpush1.msra.mxu0 0.0
    %673 = vmatprep.subr.mxu0 0.0
    %674 = vmatpush1.msra.mxu0 0.0
    %675 = vmatprep.subr.mxu0 0.0
    %676 = vmatpush1.msra.mxu0 0.0
    %677 = vmatprep.subr.mxu0 0.0
    %678 = vmatpush1.msra.mxu0 0.0
    %679 = vmatprep.mubr.f32.mxu0 0.0
    %680 = vmatmul.mubr.f32.gmra.mrb[0].mxu0 %v610
    %v681 = vpop.f32.mrb[0].mxu0
    %v682 = vadd.f32 0.0, %v681
    %v683 = vpop.f32.mrb[0].mxu0
    %684 = vmatprep.mubr.f32.mxu0 0.0
    %685 = vmatmul.mubr.f32.gmra.mrb[0].mxu0 %v613
    %v686 = vpop.f32.mrb[0].mxu0
    %v687 = vadd.f32 0.0, %v686
    %v688 = vpop.f32.mrb[0].mxu0
    %689 = vdwg.mxu0
    %v690 = vld [vmem:[%s3] sm:$0xff]
    %v691 = vld [vmem:[%s3 + $0x8] sm:$0xff]
    %v692 = vld [vmem:[%s3 + $0x10] sm:$0xff]
    %v693 = vld [vmem:[%s3 + $0x18] sm:$0xff]
    %v695 = vsel %vm99, %v682, 0
    %v698 = vsel %vm99, %v687, 0
    %700 = vmatprep.subr.mxu0 0.0
    %701 = vmatpush1.msra.mxu0 %v690
    %702 = vmatprep.subr.mxu0 0.0
    %703 = vmatpush1.msra.mxu0 %v691
    %704 = vmatprep.subr.mxu0 0.0
    %705 = vmatpush1.msra.mxu0 %v692
    %706 = vmatprep.subr.mxu0 0.0
    %707 = vmatpush1.msra.mxu0 %v693
    %708 = vmatprep.subr.mxu0 0.0
    %709 = vmatpush1.msra.mxu0 0.0
    %710 = vmatprep.subr.mxu0 0.0
    %711 = vmatpush1.msra.mxu0 0.0
    %712 = vmatprep.subr.mxu0 0.0
    %713 = vmatpush1.msra.mxu0 0.0
    %714 = vmatprep.subr.mxu0 0.0
    %715 = vmatpush1.msra.mxu0 0.0
    %716 = vmatprep.subr.mxu0 0.0
    %717 = vmatpush1.msra.mxu0 0.0
    %718 = vmatprep.subr.mxu0 0.0
    %719 = vmatpush1.msra.mxu0 0.0
    %720 = vmatprep.subr.mxu0 0.0
    %721 = vmatpush1.msra.mxu0 0.0
    %722 = vmatprep.subr.mxu0 0.0
    %723 = vmatpush1.msra.mxu0 0.0
    %724 = vmatprep.subr.mxu0 0.0
    %725 = vmatpush1.msra.mxu0 0.0
    %726 = vmatprep.subr.mxu0 0.0
    %727 = vmatpush1.msra.mxu0 0.0
    %728 = vmatprep.subr.mxu0 0.0
    %729 = vmatpush1.msra.mxu0 0.0
    %730 = vmatprep.subr.mxu0 0.0
    %731 = vmatpush1.msra.mxu0 0.0
    %732 = vmatprep.subr.mxu0 0.0
    %733 = vmatpush1.msra.mxu0 0.0
    %734 = vmatprep.subr.mxu0 0.0
    %735 = vmatpush1.msra.mxu0 0.0
    %736 = vmatprep.subr.mxu0 0.0
    %737 = vmatpush1.msra.mxu0 0.0
    %738 = vmatprep.subr.mxu0 0.0
    %739 = vmatpush1.msra.mxu0 0.0
    %740 = vmatprep.subr.mxu0 0.0
    %741 = vmatpush1.msra.mxu0 0.0
    %742 = vmatprep.subr.mxu0 0.0
    %743 = vmatpush1.msra.mxu0 0.0
    %744 = vmatprep.subr.mxu0 0.0
    %745 = vmatpush1.msra.mxu0 0.0
    %746 = vmatprep.subr.mxu0 0.0
    %747 = vmatpush1.msra.mxu0 0.0
    %748 = vmatprep.subr.mxu0 0.0
    %749 = vmatpush1.msra.mxu0 0.0
    %750 = vmatprep.subr.mxu0 0.0
    %751 = vmatpush1.msra.mxu0 0.0
    %752 = vmatprep.subr.mxu0 0.0
    %753 = vmatpush1.msra.mxu0 0.0
    %754 = vmatprep.subr.mxu0 0.0
    %755 = vmatpush1.msra.mxu0 0.0
    %756 = vmatprep.subr.mxu0 0.0
    %757 = vmatpush1.msra.mxu0 0.0
    %758 = vmatprep.subr.mxu0 0.0
    %759 = vmatpush1.msra.mxu0 0.0
    %760 = vmatprep.subr.mxu0 0.0
    %761 = vmatpush1.msra.mxu0 0.0
    %762 = vmatprep.subr.mxu0 0.0
    %763 = vmatpush1.msra.mxu0 0.0
    %764 = vmatprep.mubr.f32.mxu0 0.0
    %765 = vmatmul.mubr.f32.gmra.mrb[0].mxu0 %v695
    %v766 = vpop.f32.mrb[0].mxu0
    %v767 = vadd.f32 0.0, %v766
    %v768 = vpop.f32.mrb[0].mxu0
    %769 = vmatprep.mubr.f32.mxu0 0.0
    %770 = vmatmul.mubr.f32.gmra.mrb[0].mxu0 %v698
    %v771 = vpop.f32.mrb[0].mxu0
    %v772 = vadd.f32 0.0, %v771
    %v773 = vpop.f32.mrb[0].mxu0
    %774 = vdwg.mxu0
    %v775 = vadd.f32 %v94, %v767
    %v776 = vadd.f32 %v95, %v772
    %v777 = vmul.f32 %v775, %v775
    %v778 = vmul.f32 %v776, %v776
    %v779 = vsel %vm99, %v777, 0.0
    %780 = vadd.xlane.f32.xlu0 %v779
    %v781 = vpop.xlane.xlu0 %780
    %v782 = vsel %vm99, %v778, 0.0
    %783 = vadd.xlane.f32.xlu0 %v782
    %v784 = vpop.xlane.xlu0 %783
    %v785 = vmul.f32 %v781, %v106
    %v786 = vmul.f32 %v784, %v106
    %v787 = vadd.f32 %v785, 1e-05
    %v788 = vadd.f32 %v786, 1e-05
    %v789 = vrsqrt.pop %v787
    %v790 = vrsqrt.pop %v788
    %v791 = vmul.f32 %v775, %v789
    %v792 = vmul.f32 %v776, %v790
    %v793 = vmul.f32 %v791, %v119
    %v794 = vmul.f32 %v792, %v119
    %v795 = vld [vmem:[#allocation5] sm:$0xff]
    %v796 = vld [vmem:[#allocation5 + $0x8] sm:$0xff]
    %v797 = vld [vmem:[#allocation5 + $0x10] sm:$0xff]
    %v798 = vld [vmem:[#allocation5 + $0x18] sm:$0xff]
    %v800 = vsel %vm99, %v793, 0
    %v803 = vsel %vm99, %v794, 0
    %805 = vmatprep.subr.mxu0 0.0
    %806 = vmatpush1.msra.mxu0 %v795
    %807 = vmatprep.subr.mxu0 0.0
    %808 = vmatpush1.msra.mxu0 %v796
    %809 = vmatprep.subr.mxu0 0.0
    %810 = vmatpush1.msra.mxu0 %v797
    %811 = vmatprep.subr.mxu0 0.0
    %812 = vmatpush1.msra.mxu0 %v798
    %813 = vmatprep.subr.mxu0 0.0
    %814 = vmatpush1.msra.mxu0 0.0
    %815 = vmatprep.subr.mxu0 0.0
    %816 = vmatpush1.msra.mxu0 0.0
    %817 = vmatprep.subr.mxu0 0.0
    %818 = vmatpush1.msra.mxu0 0.0
    %819 = vmatprep.subr.mxu0 0.0
    %820 = vmatpush1.msra.mxu0 0.0
    %821 = vmatprep.subr.mxu0 0.0
    %822 = vmatpush1.msra.mxu0 0.0
    %823 = vmatprep.subr.mxu0 0.0
    %824 = vmatpush1.msra.mxu0 0.0
    %825 = vmatprep.subr.mxu0 0.0
    %826 = vmatpush1.msra.mxu0 0.0
    %827 = vmatprep.subr.mxu0 0.0
    %828 = vmatpush1.msra.mxu0 0.0
    %829 = vmatprep.subr.mxu0 0.0
    %830 = vmatpush1.msra.mxu0 0.0
    %831 = vmatprep.subr.mxu0 0.0
    %832 = vmatpush1.msra.mxu0 0.0
    %833 = vmatprep.subr.mxu0 0.0
    %834 = vmatpush1.msra.mxu0 0.0
    %835 = vmatprep.subr.mxu0 0.0
    %836 = vmatpush1.msra.mxu0 0.0
    %837 = vmatprep.subr.mxu0 0.0
    %838 = vmatpush1.msra.mxu0 0.0
    %839 = vmatprep.subr.mxu0 0.0
    %840 = vmatpush1.msra.mxu0 0.0
    %841 = vmatprep.subr.mxu0 0.0
    %842 = vmatpush1.msra.mxu0 0.0
    %843 = vmatprep.subr.mxu0 0.0
    %844 = vmatpush1.msra.mxu0 0.0
    %845 = vmatprep.subr.mxu0 0.0
    %846 = vmatpush1.msra.mxu0 0.0
    %847 = vmatprep.subr.mxu0 0.0
    %848 = vmatpush1.msra.mxu0 0.0
    %849 = vmatprep.subr.mxu0 0.0
    %850 = vmatpush1.msra.mxu0 0.0
    %851 = vmatprep.subr.mxu0 0.0
    %852 = vmatpush1.msra.mxu0 0.0
    %853 = vmatprep.subr.mxu0 0.0
    %854 = vmatpush1.msra.mxu0 0.0
    %855 = vmatprep.subr.mxu0 0.0
    %856 = vmatpush1.msra.mxu0 0.0
    %857 = vmatprep.subr.mxu0 0.0
    %858 = vmatpush1.msra.mxu0 0.0
    %859 = vmatprep.subr.mxu0 0.0
    %860 = vmatpush1.msra.mxu0 0.0
    %861 = vmatprep.subr.mxu0 0.0
    %862 = vmatpush1.msra.mxu0 0.0
    %863 = vmatprep.subr.mxu0 0.0
    %864 = vmatpush1.msra.mxu0 0.0
    %865 = vmatprep.subr.mxu0 0.0
    %866 = vmatpush1.msra.mxu0 0.0
    %867 = vmatprep.subr.mxu0 0.0
    %868 = vmatpush1.msra.mxu0 0.0
    %869 = vmatprep.mubr.f32.mxu0 0.0
    %870 = vmatmul.mubr.f32.gmra.mrb[0].mxu0 %v800
    %v871 = vpop.f32.mrb[0].mxu0
    %v872 = vadd.f32 0.0, %v871
    %v873 = vpop.f32.mrb[0].mxu0
    %874 = vmatprep.mubr.f32.mxu0 0.0
    %875 = vmatmul.mubr.f32.gmra.mrb[0].mxu0 %v803
    %v876 = vpop.f32.mrb[0].mxu0
    %v877 = vadd.f32 0.0, %v876
    %v878 = vpop.f32.mrb[0].mxu0
    %879 = vdwg.mxu0
    %v880 = vxor.u32 %v872, 2147483648
    %v881 = vxor.u32 %v877, 2147483648
    %v882 = vmul.f32 %v880, 1.442695
    %v883 = vpow.pop %v882
    %v884 = vmul.f32 %v881, 1.442695
    %v885 = vpow.pop %v884
    %v886 = vadd.f32 %v883, 1.0
    %v887 = vadd.f32 %v885, 1.0
    %v888 = vrcp.pop %v886
    %v889 = vmul.f32 1.0, %v888
    %v890 = vrcp.pop %v887
    %v891 = vmul.f32 1.0, %v890
    %v892 = vmul.f32 %v872, %v889
    %v893 = vmul.f32 %v877, %v891
    %896 = vrot.lane.b32.xlu0 %v872, 64
    %v897 = vpop.permute.xlu0 %896
    %898 = vrot.lane.b32.xlu0 %v877, 64
    %v899 = vpop.permute.xlu0 %898
    %v902 = vmul.f32 %v892, %v897
    %v903 = vmul.f32 %v893, %v899
    %v904 = vld [vmem:[%s5] sm:$0xff]
    %v905 = vld [vmem:[%s5 + $0x8] sm:$0xff]
    %v906 = vld [vmem:[%s5 + $0x10] sm:$0xff]
    %v907 = vld [vmem:[%s5 + $0x18] sm:$0xff]
    %v908 = vld [vmem:[%s5 + $0x20] sm:$0xff]
    %v909 = vld [vmem:[%s5 + $0x28] sm:$0xff]
    %v910 = vld [vmem:[%s5 + $0x30] sm:$0xff]
    %v911 = vld [vmem:[%s5 + $0x38] sm:$0xff]
    %v913 = vsel %vm465, %v902, 0
    %v916 = vsel %vm465, %v903, 0
    %918 = vmatprep.subr.mxu0 0.0
    %919 = vmatpush1.msra.mxu0 %v904
    %920 = vmatprep.subr.mxu0 0.0
    %921 = vmatpush1.msra.mxu0 %v905
    %922 = vmatprep.subr.mxu0 0.0
    %923 = vmatpush1.msra.mxu0 %v906
    %924 = vmatprep.subr.mxu0 0.0
    %925 = vmatpush1.msra.mxu0 %v907
    %926 = vmatprep.subr.mxu0 0.0
    %927 = vmatpush1.msra.mxu0 %v908
    %928 = vmatprep.subr.mxu0 0.0
    %929 = vmatpush1.msra.mxu0 %v909
    %930 = vmatprep.subr.mxu0 0.0
    %931 = vmatpush1.msra.mxu0 %v910
    %932 = vmatprep.subr.mxu0 0.0
    %933 = vmatpush1.msra.mxu0 %v911
    %934 = vmatprep.subr.mxu0 0.0
    %935 = vmatpush1.msra.mxu0 0.0
    %936 = vmatprep.subr.mxu0 0.0
    %937 = vmatpush1.msra.mxu0 0.0
    %938 = vmatprep.subr.mxu0 0.0
    %939 = vmatpush1.msra.mxu0 0.0
    %940 = vmatprep.subr.mxu0 0.0
    %941 = vmatpush1.msra.mxu0 0.0
    %942 = vmatprep.subr.mxu0 0.0
    %943 = vmatpush1.msra.mxu0 0.0
    %944 = vmatprep.subr.mxu0 0.0
    %945 = vmatpush1.msra.mxu0 0.0
    %946 = vmatprep.subr.mxu0 0.0
    %947 = vmatpush1.msra.mxu0 0.0
    %948 = vmatprep.subr.mxu0 0.0
    %949 = vmatpush1.msra.mxu0 0.0
    %950 = vmatprep.subr.mxu0 0.0
    %951 = vmatpush1.msra.mxu0 0.0
    %952 = vmatprep.subr.mxu0 0.0
    %953 = vmatpush1.msra.mxu0 0.0
    %954 = vmatprep.subr.mxu0 0.0
    %955 = vmatpush1.msra.mxu0 0.0
    %956 = vmatprep.subr.mxu0 0.0
    %957 = vmatpush1.msra.mxu0 0.0
    %958 = vmatprep.subr.mxu0 0.0
    %959 = vmatpush1.msra.mxu0 0.0
    %960 = vmatprep.subr.mxu0 0.0
    %961 = vmatpush1.msra.mxu0 0.0
    %962 = vmatprep.subr.mxu0 0.0
    %963 = vmatpush1.msra.mxu0 0.0
    %964 = vmatprep.subr.mxu0 0.0
    %965 = vmatpush1.msra.mxu0 0.0
    %966 = vmatprep.subr.mxu0 0.0
    %967 = vmatpush1.msra.mxu0 0.0
    %968 = vmatprep.subr.mxu0 0.0
    %969 = vmatpush1.msra.mxu0 0.0
    %970 = vmatprep.subr.mxu0 0.0
    %971 = vmatpush1.msra.mxu0 0.0
    %972 = vmatprep.subr.mxu0 0.0
    %973 = vmatpush1.msra.mxu0 0.0
    %974 = vmatprep.subr.mxu0 0.0
    %975 = vmatpush1.msra.mxu0 0.0
    %976 = vmatprep.subr.mxu0 0.0
    %977 = vmatpush1.msra.mxu0 0.0
    %978 = vmatprep.subr.mxu0 0.0
    %979 = vmatpush1.msra.mxu0 0.0
    %980 = vmatprep.subr.mxu0 0.0
    %981 = vmatpush1.msra.mxu0 0.0
    %982 = vmatprep.mubr.f32.mxu0 0.0
    %983 = vmatmul.mubr.f32.gmra.mrb[0].mxu0 %v913
    %v984 = vpop.f32.mrb[0].mxu0
    %v985 = vadd.f32 0.0, %v984
    %v986 = vpop.f32.mrb[0].mxu0
    %987 = vmatprep.mubr.f32.mxu0 0.0
    %988 = vmatmul.mubr.f32.gmra.mrb[0].mxu0 %v916
    %v989 = vpop.f32.mrb[0].mxu0
    %v990 = vadd.f32 0.0, %v989
    %v991 = vpop.f32.mrb[0].mxu0
    %992 = vdwg.mxu0
    %v993 = vadd.f32 %v775, %v985
    %v994 = vadd.f32 %v776, %v990
    %995 = vst.msk [vmem:[#allocation10] sm:$0xff] %vm99, %v993
    %996 = vst.msk [vmem:[#allocation10 + $0x8] sm:$0xff] %vm99, %v994
    // Predicated region
    $region62: #{tpu_custom_call.1} parent=1 // pred_check
      _
    $region63: #{tpu_custom_call.1} parent=1 // pred_check_branch
      %998 = sbr.rel (0) target = $region65
    $region64: #{tpu_custom_call.1} parent=1 // pred_region
      %s1000 = ssub.s32 256, 256
      %1001 = vsyncadd [#allocation4], %s1000
      %s1002 = sshll.u32 [#allocation10], 4
      %s1003 = int_to_ptr.vmem [resolvable:$true] %s1002
      %1008 = dma.vmem_to_hbm [thread:$0]  %s1003, 256, %s11, [#allocation4], 128, 128, 8
    $region65: #{tpu_custom_call.1} parent=1 // pred_fallthru
      _
    // Predicated region
    $region66: #{tpu_custom_call.1} parent=1 // pred_check
      _
    $region67: #{tpu_custom_call.1} parent=1 // pred_check_branch
      %1010 = sbr.rel (0) target = $region69
    $region68: #{tpu_custom_call.1} parent=1 // pred_region
      %1011 = dma.done [#allocation4], 256
    $region69: #{tpu_custom_call.1} parent=1 // pred_fallthru
      _
    %1012 = vsyncpa [#allocation3], 1
    %1013 = vsyncpa [#allocation6], 1
    %1014 = vsyncpa [#allocation9], 1
    %1015 = vsyncpa [#allocation4], 1

</llo_original>
